<compile_context>
chip_gen: v7x
topology: tpu7x:2x2x1
jax: 0.10.0
libtpu: 0.0.40
codegen_flags: <defaults>
</compile_context>

<pallas_src>
import functools

import numpy as np
import jax
import jax.numpy as jnp
from jax import lax
from jax.experimental import pallas as pl
from jax.experimental.pallas import tpu as pltpu


T_DCT_ORTHO = np.array(
    [[0.353553384542, 0.353553384542, 0.353553384542, 0.353553384542,
      0.353553384542, 0.353553384542, 0.353553384542, 0.353553384542],
     [0.490392625332, 0.415734797716, 0.277785092592, 0.097545161843,
      -0.097545161843, -0.277785092592, -0.415734797716, -0.490392625332],
     [0.461939752102, 0.191341727972, -0.191341727972, -0.461939752102,
      -0.461939752102, -0.191341727972, 0.191341727972, 0.461939752102],
     [0.415734797716, -0.097545146942, -0.490392625332, -0.277785122395,
      0.277785122395, 0.490392625332, 0.097545146942, -0.415734797716],
     [0.353553384542, -0.353553384542, -0.353553384542, 0.353553384542,
      0.353553384542, -0.353553384542, -0.353553384542, 0.353553384542],
     [0.277785092592, -0.490392625332, 0.097545191646, 0.415734827518,
      -0.415734827518, -0.097545191646, 0.490392625332, -0.277785092592],
     [0.191341713071, -0.461939752102, 0.461939752102, -0.191341713071,
      -0.191341713071, 0.461939752102, -0.461939752102, 0.191341713071],
     [0.09754511714, -0.277785152197, 0.415734797716, -0.490392655134,
      0.490392655134, -0.415734797716, 0.277785152197, -0.09754511714]],
    dtype=np.float32)

Y_PERCEPTUAL = np.array(
    [[0.01840373, 0.58999538, 0.99887572, 1.35731124, 1.51378647, 1.59615814, 1.60794642, 1.59768487],
     [0.54538216, 0.85649201, 1.15733541, 1.48270578, 1.60280835, 1.63332936, 1.6204338, 1.60154382],
     [0.97357237, 1.15783744, 1.37431718, 1.6003753, 1.66259869, 1.65741183, 1.62199538, 1.60600917],
     [1.32983939, 1.48646416, 1.60701991, 1.70982965, 1.70294495, 1.63899384, 1.62378931, 1.61771147],
     [1.51241334, 1.61619203, 1.6781811, 1.69350727, 1.68488638, 1.62312361, 1.60460837, 1.59458518],
     [1.59135561, 1.67050663, 1.67614207, 1.69062219, 1.6559363, 1.61859251, 1.58166148, 1.57357605],
     [1.62406025, 1.64713876, 1.63513799, 1.6238076, 1.6050742, 1.57471174, 1.5501197, 1.54399399],
     [1.6153739, 1.60502484, 1.59157153, 1.58655249, 1.57093044, 1.56278208, 1.54476926, 1.52678157]],
    dtype=np.float32)

Y_QUANT = np.array(
    [[16, 11, 10, 16, 24, 40, 51, 61],
     [12, 12, 14, 19, 26, 58, 60, 55],
     [14, 13, 16, 24, 40, 57, 69, 56],
     [14, 17, 22, 29, 51, 87, 80, 62],
     [18, 22, 37, 56, 68, 109, 103, 77],
     [24, 35, 55, 64, 81, 104, 113, 92],
     [49, 64, 78, 87, 103, 121, 120, 101],
     [72, 92, 95, 98, 112, 100, 103, 99]],
    dtype=np.float32)

Y_WEIGHT = Y_PERCEPTUAL / Y_QUANT

# M64 = kron(T,T)^T @ diag(w) @ kron(T,T).  For a row-major flattened 8x8 block diff d:
#   d @ M64 @ d^T  ==  sum_ij w[i,j] * (T D T^T)[i,j]^2.
_K64_F64 = np.kron(T_DCT_ORTHO.astype(np.float64), T_DCT_ORTHO.astype(np.float64))
_M64_DEFAULT = ((_K64_F64.T * Y_WEIGHT.astype(np.float64).reshape(-1)[None, :]) @ _K64_F64
                ).astype(np.float32)


def _round_up(v, m):
    return ((v + m - 1) // m) * m


def _default_num_partitions():
    """2 TensorCores per chip on v7x, 1 on v5e/v6e."""
    try:
        kind = jax.devices()[0].device_kind.lower().replace(" ", "")
    except Exception:
        return 1
    return 2 if ("v7" in kind or "tpu7" in kind) else 1


@functools.lru_cache(maxsize=None)
def _strip_lane_indices(width):
    """Lane p of an 8-row strip row (length 8*W) -> (block vec index, column-block id)."""
    p = np.arange(8 * width)
    r, c = p // width, p % width
    vec = (r * 8 + (c % 8)).astype(np.int64)   # row-major index within the 8x8 block
    blk = c // 8                               # which column-block this lane belongs to
    same_block = blk[:, None] == blk[None, :]
    return vec, same_block


def _strip_weight_matrix(width, m64):
    """Expand the 64x64 quadratic form to strip-lane order (permuted block-diagonal)."""
    vec, same = _strip_lane_indices(width)
    return m64[vec[:, None], vec[None, :]] * same


def _gram_kernel(x_ref, y_ref, g_ref, *, total_rows, need_mask, use_bf16_mxu):
    step = pl.program_id(1)

    @pl.when(step == 0)
    def _():
        g_ref[...] = jnp.zeros_like(g_ref)

    # Cast after load: HBM streams stay in the input dtype (bf16 inputs halve traffic).
    d = x_ref[...].astype(jnp.float32) - y_ref[...].astype(jnp.float32)

    if need_mask:
        tm = d.shape[0]
        start = (pl.program_id(0) * pl.num_programs(1) + step) * tm
        rows = lax.broadcasted_iota(jnp.int32, d.shape, 0)
        d = jnp.where(rows < (total_rows - start), d, 0.0)

    if use_bf16_mxu:  # optional: restores MXU margin on v5e / very wide strips.
        d = d.astype(jnp.bfloat16)

    # G += d^T @ d on the MXU (contract the row axis of both operands).
    g_ref[...] += lax.dot_general(
        d, d, dimension_numbers=(((0,), (0,)), ((), ())),
        preferred_element_type=jnp.float32)


def _gram_weighted_sum(xm, ym, m_lane, num_partitions, *, tile_bytes, use_bf16_mxu):
    """sum_s (xm[s]-ym[s]) M (xm[s]-ym[s])^T  computed as  <G, M>,  G = sum_s d_s^T d_s."""
    S, Ls = xm.shape

    tm = max(8, min((tile_bytes // (Ls * 4)) // 8 * 8, _round_up(S, 8)))
    total_blocks = -(-S // tm)
    P = max(1, min(int(num_partitions), total_blocks))
    steps = -(-total_blocks // P)
    need_mask = (P * steps * tm) != S

    def row_map(p, i):
        blk = p * steps + i
        if P * steps > total_blocks:           # keep every DMA window in-bounds
            blk = jnp.minimum(blk, total_blocks - 1)
        return (blk, 0)

    # Explicit VMEM budget: double-buffered inputs + f32 temporaries + resident Gram.
    in_bytes = 2 * tm * Ls * (xm.dtype.itemsize + ym.dtype.itemsize)
    tmp_bytes = 3 * tm * Ls * 4
    out_bytes = 2 * Ls * Ls * 4
    vmem_limit = int(min(56 << 20, max(32 << 20, 1.2 * (in_bytes + tmp_bytes + out_bytes))))

    kernel = functools.partial(_gram_kernel, total_rows=S, need_mask=need_mask,
                               use_bf16_mxu=use_bf16_mxu)

    grams = pl.pallas_call(
        kernel,
        out_shape=jax.ShapeDtypeStruct((P * Ls, Ls), jnp.float32),
        grid_spec=pltpu.PrefetchScalarGridSpec(
            num_scalar_prefetch=0,
            grid=(P, steps),
            in_specs=[pl.BlockSpec((tm, Ls), row_map),
                      pl.BlockSpec((tm, Ls), row_map)],
            out_specs=pl.BlockSpec((Ls, Ls), lambda p, i: (p, 0)),
        ),
        compiler_params=pltpu.CompilerParams(
            dimension_semantics=("parallel", "arbitrary"),
            vmem_limit_bytes=vmem_limit),
    )(xm, ym)

    return jnp.sum(grams.reshape(P, Ls, Ls) * jnp.asarray(m_lane, jnp.float32))


def _to_blocks(a):
    """NCHW -> (num_blocks, 64) row-major flattened 8x8 spatial tiles (dtype preserved)."""
    B, C, H, W = a.shape
    a = a.reshape(B, C, H // 8, 8, W // 8, 8).transpose(0, 1, 2, 4, 3, 5)
    return a.reshape(-1, 64)


def _blocked_pair(x, y, pack=2):
    xb, yb = _to_blocks(x), _to_blocks(y)
    nb = xb.shape[0]
    rows = -(-nb // pack)
    if rows * pack != nb:
        padr = ((0, rows * pack - nb), (0, 0))
        xb, yb = jnp.pad(xb, padr), jnp.pad(yb, padr)   # zero diff -> no contribution
    return xb.reshape(rows, 64 * pack), yb.reshape(rows, 64 * pack)


def _spectral_elementwise(x, y, transform, weight):
    """Plain-JAX per-element output (matches the PyTorch reduction=None path)."""
    t = jnp.asarray(T_DCT_ORTHO if transform is None else transform, jnp.float32)
    w = jnp.asarray(Y_WEIGHT if weight is None else weight, jnp.float32)
    B, C, H, W = x.shape

    def blocks(a):
        a = a.astype(jnp.float32).reshape(B, C, H, W // 8, 8)
        return jnp.transpose(a, (0, 1, 3, 2, 4)).reshape(B, C, -1, 8, 8)

    xt = jnp.einsum("ij,bcnjk,lk->bcnil", t, blocks(x), t)
    yt = jnp.einsum("ij,bcnjk,lk->bcnil", t, blocks(y), t)
    return (xt - yt) ** 2 * w


def spectral_loss_pallas(x, y, transform=None, weight=None, reduction="mean",
                         num_partitions=None, max_fused_lanes=1024,
                         tile_bytes=4 << 20, use_bf16_mxu=False):
    """Pallas TPU implementation of SpectralLoss.forward (DCT-domain weighted MSE).

    transform=None / weight=None pick the module defaults (T_DCT_ORTHO / Y_WEIGHT).
    num_partitions: leading "parallel" grid axis; None -> 1 on v5e/v6e, 2 on v7x.
    max_fused_lanes: widest 8*W strip handled by the fused (relayout-free) path.
    use_bf16_mxu: bf16 operands for the Gram matmul (keeps v5e / very wide strips
      HBM-bound at a small accuracy cost).
    """
    B, C, H, W = x.shape
    assert y.shape == x.shape, "input/target shapes must match"
    assert H % 8 == 0 and W % 8 == 0, "H and W must be multiples of 8"

    if reduction is None:
        # TODO(synk): per-element output (reduction=None) not ported to Pallas; JAX fallback.
        return _spectral_elementwise(x, y, transform, weight)
    if reduction not in ("mean", "sum"):
        raise ValueError(f"{reduction} is not a valid value for reduction")

    if transform is None and weight is None:
        m64 = _M64_DEFAULT
    else:
        t = jnp.asarray(T_DCT_ORTHO if transform is None else transform, jnp.float32)
        w = jnp.asarray(Y_WEIGHT if weight is None else weight, jnp.float32).reshape(-1)
        k = jnp.kron(t, t)
        m64 = (k.T * w[None, :]) @ k            # signed weights OK (no sqrt fold)

    P = _default_num_partitions() if num_partitions is None else max(1, int(num_partitions))

    strip_lanes = 8 * W
    if strip_lanes <= max_fused_lanes:
        # Fused path: flat-order-preserving reshape -> no HBM relayout of x / y.
        xm = x.reshape(B * C * (H // 8), strip_lanes)
        ym = y.reshape(B * C * (H // 8), strip_lanes)
        m_lane = _strip_weight_matrix(W, m64)
    else:
        # TODO(synk): wide images still pay an XLA block relayout (extra HBM round trip).
        xm, ym = _blocked_pair(x, y, pack=2)
        m_lane = jnp.kron(jnp.eye(2, dtype=jnp.float32), jnp.asarray(m64, jnp.float32))

    total = _gram_weighted_sum(xm, ym, m_lane, P,
                               tile_bytes=tile_bytes, use_bf16_mxu=use_bf16_mxu)

    if reduction == "mean":
        return total / (B * C * H * W)
    return total


def _reference_loss(x, y, T, W):
    B, C, H, Wd = x.shape
    xb = x.reshape(B, C, H // 8, 8, Wd // 8, 8).transpose(0, 1, 2, 4, 3, 5)
    yb = y.reshape(B, C, H // 8, 8, Wd // 8, 8).transpose(0, 1, 2, 4, 3, 5)
    xt = jnp.einsum("ij,...jk,lk->...il", T, xb, T)
    yt = jnp.einsum("ij,...jk,lk->...il", T, yb, T)
    return ((xt - yt) ** 2 * W).mean()


if __name__ == "__main__":
    key = jax.random.PRNGKey(0)
    k1, k2 = jax.random.split(key)

    # Primary check: default config, fused relayout-free path.
    x = jax.random.normal(k1, (2, 4, 16, 16), dtype=jnp.float32)
    y = jax.random.normal(k2, (2, 4, 16, 16), dtype=jnp.float32)
    loss_fn = jax.jit(spectral_loss_pallas)
    out = jax.block_until_ready(loss_fn(x, y))
    ref = _reference_loss(x, y, jnp.asarray(T_DCT_ORTHO), jnp.asarray(Y_WEIGHT))
    assert np.allclose(np.asarray(out), np.asarray(ref), rtol=5e-4, atol=1e-6), (out, ref)

    # Secondary check: multi-step accumulation, ragged-row mask, clamped index map,
    # and a 2-way partition axis (tiny tiles forced via tile_bytes).
    x2 = jax.random.normal(k1, (2, 3, 24, 16), dtype=jnp.float32)
    y2 = jax.random.normal(k2, (2, 3, 24, 16), dtype=jnp.float32)
    loss_fn2 = jax.jit(functools.partial(spectral_loss_pallas,
                                         num_partitions=2, tile_bytes=8 * 128 * 4))
    out2 = jax.block_until_ready(loss_fn2(x2, y2))
    ref2 = _reference_loss(x2, y2, jnp.asarray(T_DCT_ORTHO), jnp.asarray(Y_WEIGHT))
    assert np.allclose(np.asarray(out2), np.asarray(ref2), rtol=5e-4, atol=1e-6), (out2, ref2)

    print("KERNEL_OK")
</pallas_src>

<mosaic_0001>
module attributes {stable_mosaic.version = 11 : i64} {
  func.func @_gram_kernel(%arg0: i32, %arg1: i32, %arg2: memref<16x128xf32, #tpu.memory_space<vmem>>, %arg3: memref<16x128xf32, #tpu.memory_space<vmem>>, %arg4: memref<128x128xf32, #tpu.memory_space<vmem>>) attributes {dimension_semantics = [#tpu.dimension_semantics<parallel>, #tpu.dimension_semantics<arbitrary>], iteration_bounds = array<i64: 1, 1>, scalar_prefetch = 0 : i64, scratch_operands = 0 : i64, tpu.core_type = #tpu.core_type<tc>, window_params = [{transform_indices = @transform_0, window_bounds = array<i64: 16, 128>}, {transform_indices = @transform_1, window_bounds = array<i64: 16, 128>}, {transform_indices = @transform_2, window_bounds = array<i64: 128, 128>}]} {
    %c0_i32 = arith.constant 0 : i32
    %0 = arith.cmpi eq, %arg1, %c0_i32 : i32
    %1 = arith.extui %0 : i1 to i32
    %c0_i32_0 = arith.constant 0 : i32
    %2 = arith.cmpi ne, %1, %c0_i32_0 : i32
    scf.if %2 {
      %cst_8 = arith.constant 0.000000e+00 : f32
      %10 = vector.broadcast %cst_8 : f32 to vector<128x128xf32>
      %c0_9 = arith.constant 0 : index
      %c0_10 = arith.constant 0 : index
      %11 = vector.load %arg4[%c0_9, %c0_10] : memref<128x128xf32, #tpu.memory_space<vmem>>, vector<128x128xf32>
      tpu.vector_store %arg4[%c0_9, %c0_10], %10 {strides = array<i32>} : memref<128x128xf32, #tpu.memory_space<vmem>>, vector<128x128xf32>,
    } else {
    }
    %c0 = arith.constant 0 : index
    %c0_1 = arith.constant 0 : index
    %3 = vector.load %arg2[%c0, %c0_1] : memref<16x128xf32, #tpu.memory_space<vmem>>, vector<16x128xf32>
    %c0_2 = arith.constant 0 : index
    %c0_3 = arith.constant 0 : index
    %4 = vector.load %arg3[%c0_2, %c0_3] : memref<16x128xf32, #tpu.memory_space<vmem>>, vector<16x128xf32>
    %5 = arith.subf %3, %4 : vector<16x128xf32>
    %c0_4 = arith.constant 0 : index
    %c0_5 = arith.constant 0 : index
    %6 = vector.load %arg4[%c0_4, %c0_5] : memref<128x128xf32, #tpu.memory_space<vmem>>, vector<128x128xf32>
    %cst = arith.constant dense<0.000000e+00> : vector<128x128xf32>
    %7 = tpu.matmul %5, %5, %cst {dimension_numbers = #tpu.dot_dimension_numbers<[0], [0], [1], [1], [0, 1, 1, 1], [], []>} : vector<16x128xf32>, vector<16x128xf32>, vector<128x128xf32> -> vector<128x128xf32>
    %8 = arith.addf %6, %7 : vector<128x128xf32>
    %c0_6 = arith.constant 0 : index
    %c0_7 = arith.constant 0 : index
    %9 = vector.load %arg4[%c0_6, %c0_7] : memref<128x128xf32, #tpu.memory_space<vmem>>, vector<128x128xf32>
    tpu.vector_store %arg4[%c0_6, %c0_7], %8 {strides = array<i32>} : memref<128x128xf32, #tpu.memory_space<vmem>>, vector<128x128xf32>,
    return
  }
  func.func @transform_0(%arg0: i32, %arg1: i32) -> (i32, i32) {
    %c1_i32 = arith.constant 1 : i32
    %0 = arith.muli %arg0, %c1_i32 : i32
    %1 = arith.addi %0, %arg1 : i32
    %c0_i32 = arith.constant 0 : i32
    %c0_i32_0 = arith.constant 0 : i32
    return %1, %c0_i32 : i32, i32
  }
  func.func @transform_1(%arg0: i32, %arg1: i32) -> (i32, i32) {
    %c1_i32 = arith.constant 1 : i32
    %0 = arith.muli %arg0, %c1_i32 : i32
    %1 = arith.addi %0, %arg1 : i32
    %c0_i32 = arith.constant 0 : i32
    %c0_i32_0 = arith.constant 0 : i32
    return %1, %c0_i32 : i32, i32
  }
  func.func @transform_2(%arg0: i32, %arg1: i32) -> (i32, i32) {
    %c0_i32 = arith.constant 0 : i32
    %c0_i32_0 = arith.constant 0 : i32
    return %arg0, %c0_i32 : i32, i32
  }
}

</mosaic_0001>

<llo_original>
// kernel: spectral_loss_pallas.1
$region0: #{spectral_loss_pallas.1}
  #allocation0 [shape = 'u32[]', space=smem, size = 0x4, offset = 0x4, fixed_abs, tag = 'smem constant byte address 0x4 - core index']
  #allocation1 [shape = 'u32[144,128]{1,0:T(1,128)}', space=vmem, size = 0x12000, scoped, tag = 'internal scratch']
  %s0 = inlined_call_operand.vmem [shape: f32[16,128], index: 0, kind: input, shape index: {}]
  %s1 = inlined_call_operand.vmem [shape: f32[16,128], index: 1, kind: input, shape index: {}]
  %s2 = inlined_call_operand.vmem [shape: f32[128,128], index: 2, kind: output, shape index: {}]
  %s3 = sld [smem:[#allocation0]]
  $region22: #{spectral_loss_pallas.1} parent=0
    _
  %s5 = ssub.s32 1, %s3
  %s6 = scalar_select 0, %s5, %s3
  // Predicated region
  $region2: #{spectral_loss_pallas.1} parent=0 // pred_check
    _
  $region3: #{spectral_loss_pallas.1} parent=0 // pred_check_branch
    %8 = sbr.rel (0) target = $region5
  $region4: #{spectral_loss_pallas.1} parent=0 // pred_region
    %s9 = sadd.s32 0, 0
    %s10 = smul.u32 2, %s9
    %p11 = scmp.lt.s32.totalorder %s10, 1
    %s12 = scalar_select %p11, %s10, 1
    %s13 = smul.addr %s12, 8
    %s14 = scalar_lea.vmem %s0, %s13
    %s15 = sadd.s32 0, 0
    %s16 = smul.u32 2, %s15
  $region5: #{spectral_loss_pallas.1} parent=0 // pred_fallthru
    _
  // Predicated region
  $region6: #{spectral_loss_pallas.1} parent=0 // pred_check
    _
  $region7: #{spectral_loss_pallas.1} parent=0 // pred_check_branch
    %18 = sbr.rel (0) target = $region9
  $region8: #{spectral_loss_pallas.1} parent=0 // pred_region
    %s19 = sadd.s32 0, 0
    %s20 = smul.u32 2, %s19
    %p21 = scmp.lt.s32.totalorder %s20, 1
    %s22 = scalar_select %p21, %s20, 1
    %s23 = smul.addr %s22, 8
    %s24 = scalar_lea.vmem %s1, %s23
    %s25 = sadd.s32 0, 0
    %s26 = smul.u32 2, %s25
  $region9: #{spectral_loss_pallas.1} parent=0 // pred_fallthru
    _
  %s27 = sadd.s32 0, 0
  %s28 = smul.u32 2, %s27
  %p29 = scmp.lt.s32.totalorder %s28, 1
  %s30 = scalar_select %p29, %s28, 1
  %s31 = smul.addr %s30, 8
  %s32 = scalar_lea.vmem %s0, %s31
  %s33 = sadd.s32 0, 0
  %s34 = smul.u32 2, %s33
  %p35 = scmp.lt.s32.totalorder %s34, 1
  %s36 = scalar_select %p35, %s34, 1
  %s37 = smul.addr %s36, 8
  %s38 = scalar_lea.vmem %s1, %s37
  %s39 = sadd.s32 0, 0
  %s40 = smul.u32 2, %s39
  %p41 = scmp.lt.s32.totalorder %s40, 1
  %s42 = scalar_select %p41, %s40, 1
  %s43 = smul.addr %s42, 8
  %s44 = scalar_lea.vmem %s0, %s43
  %s45 = sadd.s32 0, 0
  %s46 = smul.u32 2, %s45
  %s47 = sadd.s32 0, 0
  %s48 = smul.u32 2, %s47
  %p49 = scmp.lt.s32.totalorder %s48, 1
  %s50 = scalar_select %p49, %s48, 1
  %s51 = smul.addr %s50, 8
  %s52 = scalar_lea.vmem %s1, %s51
  %s53 = sadd.s32 0, 0
  %s54 = smul.u32 2, %s53
  %p55 = scmp.eq.s32.totalorder 0, 0
  // Predicated region
  $region10: #{spectral_loss_pallas.1} parent=0 // pred_check
    %p56 = pneg %p55
  $region11: #{spectral_loss_pallas.1} parent=0 // pred_check_branch
    %58 = sbr.rel (%p56) target = $region13
  $region12: #{spectral_loss_pallas.1} parent=0 // pred_region
    %59 = vst [vmem:[%s2] sm:$0xff] 0.0
    %60 = vst [vmem:[%s2 + $0x8] sm:$0xff] 0.0
    %61 = vst [vmem:[%s2 + $0x10] sm:$0xff] 0.0
    %62 = vst [vmem:[%s2 + $0x18] sm:$0xff] 0.0
    %63 = vst [vmem:[%s2 + $0x20] sm:$0xff] 0.0
    %64 = vst [vmem:[%s2 + $0x28] sm:$0xff] 0.0
    %65 = vst [vmem:[%s2 + $0x30] sm:$0xff] 0.0
    %66 = vst [vmem:[%s2 + $0x38] sm:$0xff] 0.0
    %67 = vst [vmem:[%s2 + $0x40] sm:$0xff] 0.0
    %68 = vst [vmem:[%s2 + $0x48] sm:$0xff] 0.0
    %69 = vst [vmem:[%s2 + $0x50] sm:$0xff] 0.0
    %70 = vst [vmem:[%s2 + $0x58] sm:$0xff] 0.0
    %71 = vst [vmem:[%s2 + $0x60] sm:$0xff] 0.0
    %72 = vst [vmem:[%s2 + $0x68] sm:$0xff] 0.0
    %73 = vst [vmem:[%s2 + $0x70] sm:$0xff] 0.0
    %74 = vst [vmem:[%s2 + $0x78] sm:$0xff] 0.0
  $region13: #{spectral_loss_pallas.1} parent=0 // pred_fallthru
    _
  %v75 = vld [vmem:[%s44] sm:$0xff]
  %v76 = vld [vmem:[%s44 + $0x8] sm:$0xff]
  %v77 = vld [vmem:[%s52] sm:$0xff]
  %v78 = vld [vmem:[%s52 + $0x8] sm:$0xff]
  %v79 = vsub.f32 %v75, %v77
  %v80 = vsub.f32 %v76, %v78
  %v81 = vld [vmem:[%s2] sm:$0xff]
  %v82 = vld [vmem:[%s2 + $0x8] sm:$0xff]
  %v83 = vld [vmem:[%s2 + $0x10] sm:$0xff]
  %v84 = vld [vmem:[%s2 + $0x18] sm:$0xff]
  %v85 = vld [vmem:[%s2 + $0x20] sm:$0xff]
  %v86 = vld [vmem:[%s2 + $0x28] sm:$0xff]
  %v87 = vld [vmem:[%s2 + $0x30] sm:$0xff]
  %v88 = vld [vmem:[%s2 + $0x38] sm:$0xff]
  %v89 = vld [vmem:[%s2 + $0x40] sm:$0xff]
  %v90 = vld [vmem:[%s2 + $0x48] sm:$0xff]
  %v91 = vld [vmem:[%s2 + $0x50] sm:$0xff]
  %v92 = vld [vmem:[%s2 + $0x58] sm:$0xff]
  %v93 = vld [vmem:[%s2 + $0x60] sm:$0xff]
  %v94 = vld [vmem:[%s2 + $0x68] sm:$0xff]
  %v95 = vld [vmem:[%s2 + $0x70] sm:$0xff]
  %v96 = vld [vmem:[%s2 + $0x78] sm:$0xff]
  %97 = vxpose.xlu0.b32.start [1/16] %v79, 128
  %98 = vxpose.xlu0.b32.cont [2/16] %v80, 128
  %99 = vxpose.xlu0.b32.cont [3/16] 0.0, 128
  %100 = vxpose.xlu0.b32.cont [4/16] 0.0, 128
  %101 = vxpose.xlu0.b32.cont [5/16] 0.0, 128
  %102 = vxpose.xlu0.b32.cont [6/16] 0.0, 128
  %103 = vxpose.xlu0.b32.cont [7/16] 0.0, 128
  %104 = vxpose.xlu0.b32.cont [8/16] 0.0, 128
  %105 = vxpose.xlu0.b32.cont [9/16] 0.0, 128
  %106 = vxpose.xlu0.b32.cont [10/16] 0.0, 128
  %107 = vxpose.xlu0.b32.cont [11/16] 0.0, 128
  %108 = vxpose.xlu0.b32.cont [12/16] 0.0, 128
  %109 = vxpose.xlu0.b32.cont [13/16] 0.0, 128
  %110 = vxpose.xlu0.b32.cont [14/16] 0.0, 128
  %111 = vxpose.xlu0.b32.cont [15/16] 0.0, 128
  %112 = vxpose.xlu0.b32.end [16/16] 0.0, 128
  %v113 = vpop.trf.xlu0
  %v114 = vpop.trf.xlu0
  %v115 = vpop.trf.xlu0
  %v116 = vpop.trf.xlu0
  %v117 = vpop.trf.xlu0
  %v118 = vpop.trf.xlu0
  %v119 = vpop.trf.xlu0
  %v120 = vpop.trf.xlu0
  %v121 = vpop.trf.xlu0
  %v122 = vpop.trf.xlu0
  %v123 = vpop.trf.xlu0
  %v124 = vpop.trf.xlu0
  %v125 = vpop.trf.xlu0
  %v126 = vpop.trf.xlu0
  %v127 = vpop.trf.xlu0
  %v128 = vpop.trf.xlu0
  %vm129 = vcmask 130048
  %v131 = vsel %vm129, %v113, 0
  %v134 = vsel %vm129, %v114, 0
  %v137 = vsel %vm129, %v115, 0
  %v140 = vsel %vm129, %v116, 0
  %v143 = vsel %vm129, %v117, 0
  %v146 = vsel %vm129, %v118, 0
  %v149 = vsel %vm129, %v119, 0
  %v152 = vsel %vm129, %v120, 0
  %v155 = vsel %vm129, %v121, 0
  %v158 = vsel %vm129, %v122, 0
  %v161 = vsel %vm129, %v123, 0
  %v164 = vsel %vm129, %v124, 0
  %v167 = vsel %vm129, %v125, 0
  %v170 = vsel %vm129, %v126, 0
  %v173 = vsel %vm129, %v127, 0
  %v176 = vsel %vm129, %v128, 0
  %178 = vmatprep.subr.mxu0 0.0
  %179 = vmatpush1.msra.mxu0 %v79
  %180 = vmatprep.subr.mxu0 0.0
  %181 = vmatpush1.msra.mxu0 %v80
  %182 = vmatprep.subr.mxu0 0.0
  %183 = vmatpush1.msra.mxu0 0.0
  %184 = vmatprep.subr.mxu0 0.0
  %185 = vmatpush1.msra.mxu0 0.0
  %186 = vmatprep.subr.mxu0 0.0
  %187 = vmatpush1.msra.mxu0 0.0
  %188 = vmatprep.subr.mxu0 0.0
  %189 = vmatpush1.msra.mxu0 0.0
  %190 = vmatprep.subr.mxu0 0.0
  %191 = vmatpush1.msra.mxu0 0.0
  %192 = vmatprep.subr.mxu0 0.0
  %193 = vmatpush1.msra.mxu0 0.0
  %194 = vmatprep.subr.mxu0 0.0
  %195 = vmatpush1.msra.mxu0 0.0
  %196 = vmatprep.subr.mxu0 0.0
  %197 = vmatpush1.msra.mxu0 0.0
  %198 = vmatprep.subr.mxu0 0.0
  %199 = vmatpush1.msra.mxu0 0.0
  %200 = vmatprep.subr.mxu0 0.0
  %201 = vmatpush1.msra.mxu0 0.0
  %202 = vmatprep.subr.mxu0 0.0
  %203 = vmatpush1.msra.mxu0 0.0
  %204 = vmatprep.subr.mxu0 0.0
  %205 = vmatpush1.msra.mxu0 0.0
  %206 = vmatprep.subr.mxu0 0.0
  %207 = vmatpush1.msra.mxu0 0.0
  %208 = vmatprep.subr.mxu0 0.0
  %209 = vmatpush1.msra.mxu0 0.0
  %210 = vmatprep.subr.mxu0 0.0
  %211 = vmatpush1.msra.mxu0 0.0
  %212 = vmatprep.subr.mxu0 0.0
  %213 = vmatpush1.msra.mxu0 0.0
  %214 = vmatprep.subr.mxu0 0.0
  %215 = vmatpush1.msra.mxu0 0.0
  %216 = vmatprep.subr.mxu0 0.0
  %217 = vmatpush1.msra.mxu0 0.0
  %218 = vmatprep.subr.mxu0 0.0
  %219 = vmatpush1.msra.mxu0 0.0
  %220 = vmatprep.subr.mxu0 0.0
  %221 = vmatpush1.msra.mxu0 0.0
  %222 = vmatprep.subr.mxu0 0.0
  %223 = vmatpush1.msra.mxu0 0.0
  %224 = vmatprep.subr.mxu0 0.0
  %225 = vmatpush1.msra.mxu0 0.0
  %226 = vmatprep.subr.mxu0 0.0
  %227 = vmatpush1.msra.mxu0 0.0
  %228 = vmatprep.subr.mxu0 0.0
  %229 = vmatpush1.msra.mxu0 0.0
  %230 = vmatprep.subr.mxu0 0.0
  %231 = vmatpush1.msra.mxu0 0.0
  %232 = vmatprep.subr.mxu0 0.0
  %233 = vmatpush1.msra.mxu0 0.0
  %234 = vmatprep.subr.mxu0 0.0
  %235 = vmatpush1.msra.mxu0 0.0
  %236 = vmatprep.subr.mxu0 0.0
  %237 = vmatpush1.msra.mxu0 0.0
  %238 = vmatprep.subr.mxu0 0.0
  %239 = vmatpush1.msra.mxu0 0.0
  %240 = vmatprep.subr.mxu0 0.0
  %241 = vmatpush1.msra.mxu0 0.0
  %242 = vmatprep.mubr.f32.mxu0 0.0
  %243 = vmatmul.mubr.f32.gmra.mrb[0].mxu0 %v131
  %v244 = vpop.f32.mrb[0].mxu0
  %v245 = vadd.f32 0.0, %v244
  %v246 = vpop.f32.mrb[0].mxu0
  %247 = vmatprep.mubr.f32.mxu0 0.0
  %248 = vmatmul.mubr.f32.gmra.mrb[0].mxu0 %v134
  %v249 = vpop.f32.mrb[0].mxu0
  %v250 = vadd.f32 0.0, %v249
  %v251 = vpop.f32.mrb[0].mxu0
  %252 = vmatprep.mubr.f32.mxu0 0.0
  %253 = vmatmul.mubr.f32.gmra.mrb[0].mxu0 %v137
  %v254 = vpop.f32.mrb[0].mxu0
  %v255 = vadd.f32 0.0, %v254
  %v256 = vpop.f32.mrb[0].mxu0
  %257 = vmatprep.mubr.f32.mxu0 0.0
  %258 = vmatmul.mubr.f32.gmra.mrb[0].mxu0 %v140
  %v259 = vpop.f32.mrb[0].mxu0
  %v260 = vadd.f32 0.0, %v259
  %v261 = vpop.f32.mrb[0].mxu0
  %262 = vmatprep.mubr.f32.mxu0 0.0
  %263 = vmatmul.mubr.f32.gmra.mrb[0].mxu0 %v143
  %v264 = vpop.f32.mrb[0].mxu0
  %v265 = vadd.f32 0.0, %v264
  %v266 = vpop.f32.mrb[0].mxu0
  %267 = vmatprep.mubr.f32.mxu0 0.0
  %268 = vmatmul.mubr.f32.gmra.mrb[0].mxu0 %v146
  %v269 = vpop.f32.mrb[0].mxu0
  %v270 = vadd.f32 0.0, %v269
  %v271 = vpop.f32.mrb[0].mxu0
  %272 = vmatprep.mubr.f32.mxu0 0.0
  %273 = vmatmul.mubr.f32.gmra.mrb[0].mxu0 %v149
  %v274 = vpop.f32.mrb[0].mxu0
  %v275 = vadd.f32 0.0, %v274
  %v276 = vpop.f32.mrb[0].mxu0
  %277 = vmatprep.mubr.f32.mxu0 0.0
  %278 = vmatmul.mubr.f32.gmra.mrb[0].mxu0 %v152
  %v279 = vpop.f32.mrb[0].mxu0
  %v280 = vadd.f32 0.0, %v279
  %v281 = vpop.f32.mrb[0].mxu0
  %282 = vmatprep.mubr.f32.mxu0 0.0
  %283 = vmatmul.mubr.f32.gmra.mrb[0].mxu0 %v155
  %v284 = vpop.f32.mrb[0].mxu0
  %v285 = vadd.f32 0.0, %v284
  %v286 = vpop.f32.mrb[0].mxu0
  %287 = vmatprep.mubr.f32.mxu0 0.0
  %288 = vmatmul.mubr.f32.gmra.mrb[0].mxu0 %v158
  %v289 = vpop.f32.mrb[0].mxu0
  %v290 = vadd.f32 0.0, %v289
  %v291 = vpop.f32.mrb[0].mxu0
  %292 = vmatprep.mubr.f32.mxu0 0.0
  %293 = vmatmul.mubr.f32.gmra.mrb[0].mxu0 %v161
  %v294 = vpop.f32.mrb[0].mxu0
  %v295 = vadd.f32 0.0, %v294
  %v296 = vpop.f32.mrb[0].mxu0
  %297 = vmatprep.mubr.f32.mxu0 0.0
  %298 = vmatmul.mubr.f32.gmra.mrb[0].mxu0 %v164
  %v299 = vpop.f32.mrb[0].mxu0
  %v300 = vadd.f32 0.0, %v299
  %v301 = vpop.f32.mrb[0].mxu0
  %302 = vmatprep.mubr.f32.mxu0 0.0
  %303 = vmatmul.mubr.f32.gmra.mrb[0].mxu0 %v167
  %v304 = vpop.f32.mrb[0].mxu0
  %v305 = vadd.f32 0.0, %v304
  %v306 = vpop.f32.mrb[0].mxu0
  %307 = vmatprep.mubr.f32.mxu0 0.0
  %308 = vmatmul.mubr.f32.gmra.mrb[0].mxu0 %v170
  %v309 = vpop.f32.mrb[0].mxu0
  %v310 = vadd.f32 0.0, %v309
  %v311 = vpop.f32.mrb[0].mxu0
  %312 = vmatprep.mubr.f32.mxu0 0.0
  %313 = vmatmul.mubr.f32.gmra.mrb[0].mxu0 %v173
  %v314 = vpop.f32.mrb[0].mxu0
  %v315 = vadd.f32 0.0, %v314
  %v316 = vpop.f32.mrb[0].mxu0
  %317 = vmatprep.mubr.f32.mxu0 0.0
  %318 = vmatmul.mubr.f32.gmra.mrb[0].mxu0 %v176
  %v319 = vpop.f32.mrb[0].mxu0
  %v320 = vadd.f32 0.0, %v319
  %v321 = vpop.f32.mrb[0].mxu0
  %322 = vdwg.mxu0
  %v323 = vadd.f32 %v81, %v245
  %v324 = vadd.f32 %v82, %v250
  %v325 = vadd.f32 %v83, %v255
  %v326 = vadd.f32 %v84, %v260
  %v327 = vadd.f32 %v85, %v265
  %v328 = vadd.f32 %v86, %v270
  %v329 = vadd.f32 %v87, %v275
  %v330 = vadd.f32 %v88, %v280
  %v331 = vadd.f32 %v89, %v285
  %v332 = vadd.f32 %v90, %v290
  %v333 = vadd.f32 %v91, %v295
  %v334 = vadd.f32 %v92, %v300
  %v335 = vadd.f32 %v93, %v305
  %v336 = vadd.f32 %v94, %v310
  %v337 = vadd.f32 %v95, %v315
  %v338 = vadd.f32 %v96, %v320
  %339 = vst [vmem:[%s2] sm:$0xff] %v323
  %340 = vst [vmem:[%s2 + $0x8] sm:$0xff] %v324
  %341 = vst [vmem:[%s2 + $0x10] sm:$0xff] %v325
  %342 = vst [vmem:[%s2 + $0x18] sm:$0xff] %v326
  %343 = vst [vmem:[%s2 + $0x20] sm:$0xff] %v327
  %344 = vst [vmem:[%s2 + $0x28] sm:$0xff] %v328
  %345 = vst [vmem:[%s2 + $0x30] sm:$0xff] %v329
  %346 = vst [vmem:[%s2 + $0x38] sm:$0xff] %v330
  %347 = vst [vmem:[%s2 + $0x40] sm:$0xff] %v331
  %348 = vst [vmem:[%s2 + $0x48] sm:$0xff] %v332
  %349 = vst [vmem:[%s2 + $0x50] sm:$0xff] %v333
  %350 = vst [vmem:[%s2 + $0x58] sm:$0xff] %v334
  %351 = vst [vmem:[%s2 + $0x60] sm:$0xff] %v335
  %352 = vst [vmem:[%s2 + $0x68] sm:$0xff] %v336
  %353 = vst [vmem:[%s2 + $0x70] sm:$0xff] %v337
  %354 = vst [vmem:[%s2 + $0x78] sm:$0xff] %v338
  // Predicated region
  $region14: #{spectral_loss_pallas.1} parent=0 // pred_check
    _
  $region15: #{spectral_loss_pallas.1} parent=0 // pred_check_branch
    %356 = sbr.rel (0) target = $region17
  $region16: #{spectral_loss_pallas.1} parent=0 // pred_region
    _
  $region17: #{spectral_loss_pallas.1} parent=0 // pred_fallthru
    _
  // Predicated region
  $region18: #{spectral_loss_pallas.1} parent=0 // pred_check
    _
  $region19: #{spectral_loss_pallas.1} parent=0 // pred_check_branch
    %358 = sbr.rel (0) target = $region21
  $region20: #{spectral_loss_pallas.1} parent=0 // pred_region
    _
  $region21: #{spectral_loss_pallas.1} parent=0 // pred_fallthru
    _

</llo_original>
